<compile_context>
chip_gen: v6e
topology: v6e:2x2x1
jax: 0.10.0
libtpu: 0.0.40
codegen_flags: <defaults>
</compile_context>

<pallas_src>
import functools
import math

import jax
import jax.numpy as jnp
from jax.experimental import pallas as pl
from jax.experimental.pallas import tpu as pltpu

EPS = 1e-6          # module spec passes 1e-06 explicitly to F.layer_norm
_LANES = 128


# ----------------------------------------------------------------------------
# Hardware-aware budgets
# ----------------------------------------------------------------------------
def _tpu_vmem_capacity_bytes():
    """Physical per-core VMEM (128 MiB on v5e/v6e, 64 MiB on v7x)."""
    try:
        info = pltpu.get_tpu_info()
        cap = getattr(info, "vmem_capacity_bytes", None)
        if cap:
            return int(cap)
    except Exception:
        pass
    return 64 * 1024 * 1024  # conservative fallback: assume v7x-sized VMEM


def _budgets():
    cap = _tpu_vmem_capacity_bytes()
    # Request ~70% of physical VMEM (not all of it): ~44 MiB on v7x,
    # ~94 MiB on v5e/v6e.  Leaves headroom for compiler-internal scratch.
    vmem_limit = max(int(cap * 0.70), 16 * 1024 * 1024)
    # Per-block budget in f32-equivalent bytes.  Working set is roughly
    # 4 double-buffered I/O blocks + ~8-10 f32/bf16 temporaries, so /14 keeps
    # the footprint inside `vmem_limit` while still producing ~3-7 MiB blocks.
    block_budget_f32 = max(vmem_limit // 14, 1 << 20)
    # v7x has two TensorCores (and only 64 MiB VMEM): keep >= 4 grid steps so
    # megacore sharding feeds both cores.  Single-TC v5e/v6e only need >= 2
    # steps for pipeline overlap (and only when blocks stay big, see below).
    min_steps = 4 if cap <= 64 * 1024 * 1024 else 2
    return vmem_limit, block_budget_f32, min_steps


# ----------------------------------------------------------------------------
# Kernels
# ----------------------------------------------------------------------------
def _ln_rowwise_kernel(*refs, eps, has_bias):
    """Generic layout: one logical row per block row. Block: (tile, D)."""
    if has_bias:
        x_ref, w_ref, b_ref, o_ref = refs
    else:
        x_ref, w_ref, o_ref = refs
        b_ref = None
    x = x_ref[...].astype(jnp.float32)
    d = x.shape[-1]
    inv_d = 1.0 / d
    # Two-pass statistics (mean, then centered variance): avoids the
    # E[x^2]-E[x]^2 cancellation; XLU reductions are hidden under the DMA.
    mean = jnp.sum(x, axis=-1, keepdims=True) * inv_d
    c = x - mean
    var = jnp.sum(c * c, axis=-1, keepdims=True) * inv_d
    inv = jax.lax.rsqrt(var + eps)                      # EUP
    y = c * inv * w_ref[...].astype(jnp.float32)
    if has_bias:
        y = y + b_ref[...].astype(jnp.float32)
    o_ref[...] = y.astype(o_ref.dtype)


def _split3_bf16(v):
    """Split an f32 array into 3 bf16 terms whose sum is ~f32-accurate."""
    hi = v.astype(jnp.bfloat16)
    r1 = v - hi.astype(jnp.float32)
    md = r1.astype(jnp.bfloat16)
    lo = (r1 - md.astype(jnp.float32)).astype(jnp.bfloat16)
    return hi, md, lo


def _seg_sum(v, s_bf16):
    """Per-segment (block-diagonal) sum broadcast across segment lanes.

    S is exactly 0/1 (bf16-representable), so only the data operand needs
    splitting: 3 single-pass bf16 MXU matmuls ~= f32 accuracy at half the
    passes of Precision.HIGHEST on both operands.
    """
    hi, md, lo = _split3_bf16(v)
    acc = jnp.dot(hi, s_bf16, preferred_element_type=jnp.float32)
    acc = acc + jnp.dot(md, s_bf16, preferred_element_type=jnp.float32)
    acc = acc + jnp.dot(lo, s_bf16, preferred_element_type=jnp.float32)
    return acc


def _ln_packed_kernel(*refs, d, eps, has_bias):
    """Lane-dense layout for small D: P = 128 // d logical rows per block row.

    Block: (tile, 128).  Per-row (segmented) sums run on the otherwise-idle
    MXU using the resident bf16 block-diagonal matrix `s_ref` (hoisted out of
    the grid loop), keeping loads/stores/VPU work lane-dense.
    """
    if has_bias:
        x_ref, s_ref, w_ref, b_ref, o_ref = refs
    else:
        x_ref, s_ref, w_ref, o_ref = refs
        b_ref = None
    x = x_ref[...].astype(jnp.float32)
    s = s_ref[...]                                      # bf16, fetched once
    inv_d = 1.0 / d
    mean = _seg_sum(x, s) * inv_d
    c = x - mean
    var = _seg_sum(c * c, s) * inv_d
    inv = jax.lax.rsqrt(var + eps)                      # EUP
    y = c * inv * w_ref[...].astype(jnp.float32)
    if has_bias:
        y = y + b_ref[...].astype(jnp.float32)
    o_ref[...] = y.astype(o_ref.dtype)


# ----------------------------------------------------------------------------
# Tiling
# ----------------------------------------------------------------------------
def _pick_tile_rows(rows, lane_width, dtype_bytes, block_budget_f32, min_steps):
    """Row-tile: big enough to amortize per-step overhead, small enough that
    double-buffered I/O blocks plus f32 temporaries fit the scoped-VMEM budget
    on the current generation."""
    pack = max(8, 32 // dtype_bytes)        # sublane packing: 8 f32, 16 bf16
    if rows <= pack:
        return rows                          # full-extent block (always legal)
    # TODO(synk): for extremely large D (~1e5 f32), even the minimum 8-row
    # tile can exceed a v7x VMEM budget; that case needs a two-pass
    # (stats, then normalize) kernel with D split over an 'arbitrary' axis.
    t = block_budget_f32 // (lane_width * 4)
    t = max(pack, (t // pack) * pack)
    if min_steps > 1:
        t_cap = -(-rows // min_steps)
        t_cap = max(pack, -(-t_cap // pack) * pack)
        # Only force extra grid steps when the capped block still amortizes
        # the ~0.35us per-step pipeline overhead (>= ~1 MiB in input dtype).
        if t_cap * lane_width * dtype_bytes >= (1 << 20):
            t = min(t, t_cap)
    return rows if t >= rows else t


# ----------------------------------------------------------------------------
# Wrapper
# ----------------------------------------------------------------------------
def layer_norm(x, weight, bias=None, *, eps=EPS, tile_rows=None):
    """LayerNorm over the last axis of `x`. x: (..., D); weight/bias: (D,)."""
    orig_shape = x.shape
    d = orig_shape[-1]
    rows = math.prod(orig_shape[:-1])
    has_bias = bias is not None

    vmem_limit, block_budget_f32, min_steps = _budgets()

    packed = d < _LANES and _LANES % d == 0 and rows % (_LANES // d) == 0
    if packed:
        # Lane-dense packing: fold P = 128 // d logical rows into one 128-lane
        # row (free reshape of a contiguous array).
        p = _LANES // d
        lane_width = _LANES
        k_rows = rows // p
        x2 = x.reshape(k_rows, lane_width)
        w2 = jnp.tile(weight.reshape(1, d), (1, p))
        b2 = jnp.tile(bias.reshape(1, d), (1, p)) if has_bias else None
        seg = jnp.arange(_LANES, dtype=jnp.int32) // d
        s_mat = (seg[:, None] == seg[None, :]).astype(jnp.bfloat16)
        kernel = functools.partial(_ln_packed_kernel, d=d, eps=eps,
                                   has_bias=has_bias)
    else:
        lane_width = d
        k_rows = rows
        x2 = x.reshape(k_rows, d)
        w2 = weight.reshape(1, d)
        b2 = bias.reshape(1, d) if has_bias else None
        s_mat = None
        kernel = functools.partial(_ln_rowwise_kernel, eps=eps,
                                   has_bias=has_bias)

    dtype_bytes = jnp.dtype(x.dtype).itemsize
    if tile_rows is None:
        tile_rows = _pick_tile_rows(k_rows, lane_width, dtype_bytes,
                                    block_budget_f32, min_steps)
    else:
        pack = max(8, 32 // dtype_bytes)
        tile_rows = (k_rows if tile_rows >= k_rows
                     else max(pack, (tile_rows // pack) * pack))

    grid = (pl.cdiv(k_rows, tile_rows),)     # ragged last block, no padding

    row_spec = pl.BlockSpec((tile_rows, lane_width), lambda i: (i, 0))
    vec_spec = pl.BlockSpec((1, lane_width), lambda i: (0, 0))

    in_specs = [row_spec]
    inputs = [x2]
    if packed:
        in_specs.append(pl.BlockSpec((_LANES, _LANES), lambda i: (0, 0)))
        inputs.append(s_mat)                 # resident, fetched once
    in_specs.append(vec_spec)
    inputs.append(w2)
    if has_bias:
        in_specs.append(vec_spec)
        inputs.append(b2)

    out = pl.pallas_call(
        kernel,
        out_shape=jax.ShapeDtypeStruct((k_rows, lane_width), x.dtype),
        grid_spec=pltpu.PrefetchScalarGridSpec(
            num_scalar_prefetch=0,
            grid=grid,
            in_specs=in_specs,
            out_specs=row_spec,
        ),
        compiler_params=pltpu.CompilerParams(
            dimension_semantics=("parallel",),
            vmem_limit_bytes=vmem_limit,
        ),
    )(*inputs)

    return out.reshape(orig_shape)


# ----------------------------------------------------------------------------
# Reference + tests
# ----------------------------------------------------------------------------
def _reference_layer_norm(x, weight, bias, eps=EPS):
    xf = x.astype(jnp.float32)
    mean = jnp.mean(xf, axis=-1, keepdims=True)
    var = jnp.mean((xf - mean) ** 2, axis=-1, keepdims=True)
    y = (xf - mean) * jax.lax.rsqrt(var + eps) * weight.astype(jnp.float32)
    if bias is not None:
        y = y + bias.astype(jnp.float32)
    return y.astype(x.dtype)


if __name__ == "__main__":
    key = jax.random.PRNGKey(0)
    k0, k1, k2, k3, k4 = jax.random.split(key, 5)

    # Module config from the spec: ndim = hidden = 32, bias = True.
    B, T, D = 2, 8, 32
    x = jax.random.normal(k0, (B, T, D), dtype=jnp.float32)
    weight = jnp.ones((D,), dtype=jnp.float32)   # nn.Parameter(torch.ones(ndim))
    bias = jnp.zeros((D,), dtype=jnp.float32)    # nn.Parameter(torch.zeros(ndim))

    out = jax.block_until_ready(layer_norm(x, weight, bias))
    ref = _reference_layer_norm(x, weight, bias)
    assert out.shape == x.shape and out.dtype == x.dtype
    assert jnp.allclose(out, ref, atol=2e-5, rtol=2e-5), "mismatch (packed, bias)"

    # bias=False module variant (specialized no-bias kernel).
    out_nb = jax.block_until_ready(layer_norm(x, weight, None))
    ref_nb = _reference_layer_norm(x, weight, None)
    assert jnp.allclose(out_nb, ref_nb, atol=2e-5, rtol=2e-5), "mismatch (packed, no bias)"

    # Generic row-wise path with random weight/bias (D not a multiple of 128).
    B2, T2, D2 = 4, 50, 192
    x2 = jax.random.normal(k1, (B2, T2, D2), dtype=jnp.float32)
    w2 = jax.random.normal(k2, (D2,), dtype=jnp.float32)
    b2 = jax.random.normal(k3, (D2,), dtype=jnp.float32)
    out2 = jax.block_until_ready(layer_norm(x2, w2, b2))
    ref2 = _reference_layer_norm(x2, w2, b2)
    assert jnp.allclose(out2, ref2, atol=2e-5, rtol=2e-5), "mismatch (row-wise path)"

    # Small-D shape that cannot pack evenly (rows % (128//D) != 0) -> row-wise.
    x3 = jax.random.normal(k1, (3, 5, 32), dtype=jnp.float32)
    w3 = jnp.ones((32,), dtype=jnp.float32)
    out3 = jax.block_until_ready(layer_norm(x3, w3, None))
    ref3 = _reference_layer_norm(x3, w3, None)
    assert jnp.allclose(out3, ref3, atol=2e-5, rtol=2e-5), "mismatch (ragged small-D)"

    # Larger input that exercises a multi-step grid (pipelined row tiles).
    R4, D4 = 16384, 128
    x4 = jax.random.normal(k4, (R4, D4), dtype=jnp.float32)
    w4 = jax.random.normal(k2, (D4,), dtype=jnp.float32)
    b4 = jax.random.normal(k3, (D4,), dtype=jnp.float32)
    out4 = jax.block_until_ready(layer_norm(x4, w4, b4))
    ref4 = _reference_layer_norm(x4, w4, b4)
    assert jnp.allclose(out4, ref4, atol=2e-5, rtol=2e-5), "mismatch (multi-block grid)"

    print("KERNEL_OK")
</pallas_src>

<mosaic_0001>
module attributes {stable_mosaic.version = 11 : i64} {
  func.func @_ln_packed_kernel(%arg0: i32, %arg1: memref<4x128xf32, #tpu.memory_space<vmem>>, %arg2: memref<128x128xbf16, #tpu.memory_space<vmem>>, %arg3: memref<1x128xf32, #tpu.memory_space<vmem>>, %arg4: memref<1x128xf32, #tpu.memory_space<vmem>>, %arg5: memref<4x128xf32, #tpu.memory_space<vmem>>) attributes {dimension_semantics = [#tpu.dimension_semantics<parallel>], iteration_bounds = array<i64: 1>, scalar_prefetch = 0 : i64, scratch_operands = 0 : i64, tpu.core_type = #tpu.core_type<tc>, window_params = [{transform_indices = @transform_0, window_bounds = array<i64: 4, 128>}, {pipeline_mode = #tpu.pipeline_mode<synchronous>, transform_indices = @transform_1, window_bounds = array<i64: 128, 128>}, {pipeline_mode = #tpu.pipeline_mode<synchronous>, transform_indices = @transform_2, window_bounds = array<i64: 1, 128>}, {pipeline_mode = #tpu.pipeline_mode<synchronous>, transform_indices = @transform_3, window_bounds = array<i64: 1, 128>}, {transform_indices = @transform_4, window_bounds = array<i64: 4, 128>}]} {
    %c0 = arith.constant 0 : index
    %c0_0 = arith.constant 0 : index
    %0 = vector.load %arg1[%c0, %c0_0] : memref<4x128xf32, #tpu.memory_space<vmem>>, vector<4x128xf32>
    %c0_1 = arith.constant 0 : index
    %c0_2 = arith.constant 0 : index
    %1 = vector.load %arg2[%c0_1, %c0_2] : memref<128x128xbf16, #tpu.memory_space<vmem>>, vector<128x128xbf16>
    %2 = arith.truncf %0 : vector<4x128xf32> to vector<4x128xbf16>
    %3 = arith.extf %2 : vector<4x128xbf16> to vector<4x128xf32>
    %4 = arith.subf %0, %3 : vector<4x128xf32>
    %5 = arith.truncf %4 : vector<4x128xf32> to vector<4x128xbf16>
    %6 = arith.extf %5 : vector<4x128xbf16> to vector<4x128xf32>
    %7 = arith.subf %4, %6 : vector<4x128xf32>
    %8 = arith.truncf %7 : vector<4x128xf32> to vector<4x128xbf16>
    %cst = arith.constant dense<0.000000e+00> : vector<4x128xf32>
    %9 = tpu.matmul %2, %1, %cst {dimension_numbers = #tpu.dot_dimension_numbers<[1], [0], [0], [1], [0, 0, 1, 1], [], []>} : vector<4x128xbf16>, vector<128x128xbf16>, vector<4x128xf32> -> vector<4x128xf32>
    %cst_3 = arith.constant dense<0.000000e+00> : vector<4x128xf32>
    %10 = tpu.matmul %5, %1, %cst_3 {dimension_numbers = #tpu.dot_dimension_numbers<[1], [0], [0], [1], [0, 0, 1, 1], [], []>} : vector<4x128xbf16>, vector<128x128xbf16>, vector<4x128xf32> -> vector<4x128xf32>
    %11 = arith.addf %9, %10 : vector<4x128xf32>
    %cst_4 = arith.constant dense<0.000000e+00> : vector<4x128xf32>
    %12 = tpu.matmul %8, %1, %cst_4 {dimension_numbers = #tpu.dot_dimension_numbers<[1], [0], [0], [1], [0, 0, 1, 1], [], []>} : vector<4x128xbf16>, vector<128x128xbf16>, vector<4x128xf32> -> vector<4x128xf32>
    %13 = arith.addf %11, %12 : vector<4x128xf32>
    %cst_5 = arith.constant 3.125000e-02 : f32
    %14 = vector.broadcast %cst_5 : f32 to vector<4x128xf32>
    %15 = arith.mulf %13, %14 : vector<4x128xf32>
    %16 = arith.subf %0, %15 : vector<4x128xf32>
    %17 = arith.mulf %16, %16 : vector<4x128xf32>
    %18 = arith.truncf %17 : vector<4x128xf32> to vector<4x128xbf16>
    %19 = arith.extf %18 : vector<4x128xbf16> to vector<4x128xf32>
    %20 = arith.subf %17, %19 : vector<4x128xf32>
    %21 = arith.truncf %20 : vector<4x128xf32> to vector<4x128xbf16>
    %22 = arith.extf %21 : vector<4x128xbf16> to vector<4x128xf32>
    %23 = arith.subf %20, %22 : vector<4x128xf32>
    %24 = arith.truncf %23 : vector<4x128xf32> to vector<4x128xbf16>
    %cst_6 = arith.constant dense<0.000000e+00> : vector<4x128xf32>
    %25 = tpu.matmul %18, %1, %cst_6 {dimension_numbers = #tpu.dot_dimension_numbers<[1], [0], [0], [1], [0, 0, 1, 1], [], []>} : vector<4x128xbf16>, vector<128x128xbf16>, vector<4x128xf32> -> vector<4x128xf32>
    %cst_7 = arith.constant dense<0.000000e+00> : vector<4x128xf32>
    %26 = tpu.matmul %21, %1, %cst_7 {dimension_numbers = #tpu.dot_dimension_numbers<[1], [0], [0], [1], [0, 0, 1, 1], [], []>} : vector<4x128xbf16>, vector<128x128xbf16>, vector<4x128xf32> -> vector<4x128xf32>
    %27 = arith.addf %25, %26 : vector<4x128xf32>
    %cst_8 = arith.constant dense<0.000000e+00> : vector<4x128xf32>
    %28 = tpu.matmul %24, %1, %cst_8 {dimension_numbers = #tpu.dot_dimension_numbers<[1], [0], [0], [1], [0, 0, 1, 1], [], []>} : vector<4x128xbf16>, vector<128x128xbf16>, vector<4x128xf32> -> vector<4x128xf32>
    %29 = arith.addf %27, %28 : vector<4x128xf32>
    %cst_9 = arith.constant 3.125000e-02 : f32
    %30 = vector.broadcast %cst_9 : f32 to vector<4x128xf32>
    %31 = arith.mulf %29, %30 : vector<4x128xf32>
    %cst_10 = arith.constant 9.99999997E-7 : f32
    %32 = vector.broadcast %cst_10 : f32 to vector<4x128xf32>
    %33 = arith.addf %31, %32 : vector<4x128xf32>
    %34 = math.rsqrt %33 : vector<4x128xf32>
    %35 = arith.mulf %16, %34 : vector<4x128xf32>
    %c0_11 = arith.constant 0 : index
    %c0_12 = arith.constant 0 : index
    %36 = vector.load %arg3[%c0_11, %c0_12] : memref<1x128xf32, #tpu.memory_space<vmem>>, vector<1x128xf32>
    %37 = vector.broadcast %36 : vector<1x128xf32> to vector<4x128xf32>
    %38 = arith.mulf %35, %37 : vector<4x128xf32>
    %c0_13 = arith.constant 0 : index
    %c0_14 = arith.constant 0 : index
    %39 = vector.load %arg4[%c0_13, %c0_14] : memref<1x128xf32, #tpu.memory_space<vmem>>, vector<1x128xf32>
    %40 = vector.broadcast %39 : vector<1x128xf32> to vector<4x128xf32>
    %41 = arith.addf %38, %40 : vector<4x128xf32>
    %c0_15 = arith.constant 0 : index
    %c0_16 = arith.constant 0 : index
    %42 = vector.load %arg5[%c0_15, %c0_16] : memref<4x128xf32, #tpu.memory_space<vmem>>, vector<4x128xf32>
    tpu.vector_store %arg5[%c0_15, %c0_16], %41 {strides = array<i32>} : memref<4x128xf32, #tpu.memory_space<vmem>>, vector<4x128xf32>,
    return
  }
  func.func @transform_0(%arg0: i32) -> (i32, i32) {
    %c0_i32 = arith.constant 0 : i32
    %c0_i32_0 = arith.constant 0 : i32
    return %arg0, %c0_i32 : i32, i32
  }
  func.func @transform_1(%arg0: i32) -> (i32, i32) {
    %c0_i32 = arith.constant 0 : i32
    %c0_i32_0 = arith.constant 0 : i32
    %c0_i32_1 = arith.constant 0 : i32
    return %c0_i32, %c0_i32_0 : i32, i32
  }
  func.func @transform_2(%arg0: i32) -> (i32, i32) {
    %c0_i32 = arith.constant 0 : i32
    %c0_i32_0 = arith.constant 0 : i32
    %c0_i32_1 = arith.constant 0 : i32
    return %c0_i32, %c0_i32_0 : i32, i32
  }
  func.func @transform_3(%arg0: i32) -> (i32, i32) {
    %c0_i32 = arith.constant 0 : i32
    %c0_i32_0 = arith.constant 0 : i32
    %c0_i32_1 = arith.constant 0 : i32
    return %c0_i32, %c0_i32_0 : i32, i32
  }
  func.func @transform_4(%arg0: i32) -> (i32, i32) {
    %c0_i32 = arith.constant 0 : i32
    %c0_i32_0 = arith.constant 0 : i32
    return %arg0, %c0_i32 : i32, i32
  }
}

</mosaic_0001>

<llo_original>
// kernel: tpu_custom_call.1
$region0: #{tpu_custom_call.1}
  #allocation0 [shape = 'u32[]', space=smem, size = 0x4, offset = 0x4, fixed_abs, tag = 'smem constant byte address 0x4 - core index']
  #allocation1 [shape = 'u32[144,128]{1,0:T(1,128)}', space=vmem, size = 0x12000, scoped, tag = 'internal scratch']
  %s0 = inlined_call_operand.hbm [shape: f32[4,128], index: 0, kind: input, shape index: {}]
  %s1 = inlined_call_operand.hbm [shape: bf16[128,128], index: 1, kind: input, shape index: {}]
  %s2 = inlined_call_operand.vmem [shape: f32[1,128], index: 2, kind: input, shape index: {}]
  %s3 = inlined_call_operand.vmem [shape: f32[1,128], index: 3, kind: input, shape index: {}]
  %s4 = inlined_call_operand.hbm [shape: f32[4,128], index: 4, kind: output, shape index: {}]
  %s5 = sld [smem:[#allocation0]]
  $region34: #{tpu_custom_call.1} parent=0
    _
  %s7 = ssub.s32 1, %s5
  %s8 = scalar_select 0, %s7, %s5
  $region1: #{tpu_custom_call.1} parent=0
    #allocation2 [shape = 'u8[2048]{0}', space=vmem, size = 0x800, scoped, tag = 'input window, operand 0, single buffered']
    #allocation3 [shape = 's32[1]{0}', space=sflag, size = 0x4, scoped, tag = 'scoped memory for tpu_custom_call.1']
    #allocation4 [shape = 's32[1]{0}', space=sflag, size = 0x4, scoped, tag = 'scoped memory for tpu_custom_call.1']
    #allocation5 [shape = 'u8[32768]{0}', space=vmem, size = 0x8000, scoped, tag = 'input window, operand 1, single buffered']
    #allocation6 [shape = 's32[1]{0}', space=sflag, size = 0x4, scoped, tag = 'scoped memory for tpu_custom_call.1']
    #allocation7 [shape = 'u8[2048]{0}', space=vmem, size = 0x800, scoped, tag = 'output window, operand 0, single buffered']
    %9 = vsyncpa [#allocation3], 0
    %10 = vsyncpa [#allocation6], 0
    %11 = vsyncpa [#allocation4], 0
    // Predicated region
    $region2: #{tpu_custom_call.1} parent=1 // pred_check
      _
    $region3: #{tpu_custom_call.1} parent=1 // pred_check_branch
      %13 = sbr.rel (0) target = $region5
    $region4: #{tpu_custom_call.1} parent=1 // pred_region
      %s15 = ssub.s32 64, 64
      %16 = vsyncadd [#allocation3], %s15
      %s18 = sshll.u32 [#allocation2], 4
      %s19 = int_to_ptr.vmem [resolvable:$true] %s18
      %21 = dma.hbm_to_vmem [thread:$0]  %s0, 64, %s19, [#allocation3]
    $region5: #{tpu_custom_call.1} parent=1 // pred_fallthru
      _
    // Predicated region
    $region6: #{tpu_custom_call.1} parent=1 // pred_check
      _
    $region7: #{tpu_custom_call.1} parent=1 // pred_check_branch
      %23 = sbr.rel (0) target = $region9
    $region8: #{tpu_custom_call.1} parent=1 // pred_region
      %s25 = ssub.s32 1024, 1024
      %26 = vsyncadd [#allocation6], %s25
      %s27 = sshll.u32 [#allocation5], 4
      %s28 = int_to_ptr.vmem [resolvable:$true] %s27
      %33 = dma.hbm_to_vmem [thread:$0]  %s1, 1024, %s28, [#allocation6], 64, 64, 4
    $region9: #{tpu_custom_call.1} parent=1 // pred_fallthru
      _
    // Predicated region
    $region10: #{tpu_custom_call.1} parent=1 // pred_check
      _
    $region11: #{tpu_custom_call.1} parent=1 // pred_check_branch
      %35 = sbr.rel (0) target = $region13
    $region12: #{tpu_custom_call.1} parent=1 // pred_region
      _
    $region13: #{tpu_custom_call.1} parent=1 // pred_fallthru
      _
    // Predicated region
    $region14: #{tpu_custom_call.1} parent=1 // pred_check
      _
    $region15: #{tpu_custom_call.1} parent=1 // pred_check_branch
      %37 = sbr.rel (0) target = $region17
    $region16: #{tpu_custom_call.1} parent=1 // pred_region
      _
    $region17: #{tpu_custom_call.1} parent=1 // pred_fallthru
      _
    // Predicated region
    $region18: #{tpu_custom_call.1} parent=1 // pred_check
      _
    $region19: #{tpu_custom_call.1} parent=1 // pred_check_branch
      %39 = sbr.rel (0) target = $region21
    $region20: #{tpu_custom_call.1} parent=1 // pred_region
      %40 = dma.done [#allocation3], 64
    $region21: #{tpu_custom_call.1} parent=1 // pred_fallthru
      _
    // Predicated region
    $region22: #{tpu_custom_call.1} parent=1 // pred_check
      _
    $region23: #{tpu_custom_call.1} parent=1 // pred_check_branch
      %42 = sbr.rel (0) target = $region25
    $region24: #{tpu_custom_call.1} parent=1 // pred_region
      %43 = dma.done [#allocation6], 1024
    $region25: #{tpu_custom_call.1} parent=1 // pred_fallthru
      _
    %v45 = vld [vmem:[#allocation2] sm:$0xf]
    %v46 = vld [vmem:[#allocation5] sm:$0xf]
    %v47 = vld [vmem:[#allocation5 + $0x4] sm:$0xf]
    %v48 = vld [vmem:[#allocation5 + $0x8] sm:$0xf]
    %v49 = vld [vmem:[#allocation5 + $0xc] sm:$0xf]
    %v50 = vld [vmem:[#allocation5 + $0x10] sm:$0xf]
    %v51 = vld [vmem:[#allocation5 + $0x14] sm:$0xf]
    %v52 = vld [vmem:[#allocation5 + $0x18] sm:$0xf]
    %v53 = vld [vmem:[#allocation5 + $0x1c] sm:$0xf]
    %v54 = vld [vmem:[#allocation5 + $0x20] sm:$0xf]
    %v55 = vld [vmem:[#allocation5 + $0x24] sm:$0xf]
    %v56 = vld [vmem:[#allocation5 + $0x28] sm:$0xf]
    %v57 = vld [vmem:[#allocation5 + $0x2c] sm:$0xf]
    %v58 = vld [vmem:[#allocation5 + $0x30] sm:$0xf]
    %v59 = vld [vmem:[#allocation5 + $0x34] sm:$0xf]
    %v60 = vld [vmem:[#allocation5 + $0x38] sm:$0xf]
    %v61 = vld [vmem:[#allocation5 + $0x3c] sm:$0xf]
    %v62 = vpack.c.bf16 %v45, %v45
    %v63 = vunpack.c.l.bf16 %v62
    %v64 = vsub.f32 %v45, %v63
    %v65 = vpack.c.bf16 %v64, %v64
    %v66 = vunpack.c.l.bf16 %v65
    %v67 = vsub.f32 %v64, %v66
    %v68 = vpack.c.bf16 %v67, %v67
    %v85 = vunpack.c.l.b16 %v46
    %v86 = vunpack.c.l.b16 %v47
    %v87 = vunpack.c.l.b16 %v48
    %v88 = vunpack.c.l.b16 %v49
    %v89 = vunpack.c.l.b16 %v50
    %v90 = vunpack.c.l.b16 %v51
    %v91 = vunpack.c.l.b16 %v52
    %v92 = vunpack.c.l.b16 %v53
    %v93 = vunpack.c.l.b16 %v54
    %v94 = vunpack.c.l.b16 %v55
    %v95 = vunpack.c.l.b16 %v56
    %v96 = vunpack.c.l.b16 %v57
    %v97 = vunpack.c.l.b16 %v58
    %v98 = vunpack.c.l.b16 %v59
    %v99 = vunpack.c.l.b16 %v60
    %v100 = vunpack.c.l.b16 %v61
    %v101 = vpack.c.b16 %v86, %v85
    %v102 = vpack.c.b16 %v88, %v87
    %v103 = vpack.c.b16 %v90, %v89
    %v104 = vpack.c.b16 %v92, %v91
    %v105 = vpack.c.b16 %v94, %v93
    %v106 = vpack.c.b16 %v96, %v95
    %v107 = vpack.c.b16 %v98, %v97
    %v108 = vpack.c.b16 %v100, %v99
    %117 = vmatprep.subr.bf16.mxu0 0
    %118 = vmatpush1.bf16.msra.mxu0 %v108
    %119 = vmatprep.subr.bf16.mxu0 0
    %120 = vmatpush1.bf16.msra.mxu0 %v107
    %121 = vmatprep.subr.bf16.mxu0 0
    %122 = vmatpush1.bf16.msra.mxu0 %v106
    %123 = vmatprep.subr.bf16.mxu0 0
    %124 = vmatpush1.bf16.msra.mxu0 %v105
    %125 = vmatprep.subr.bf16.mxu0 0
    %126 = vmatpush1.bf16.msra.mxu0 %v104
    %127 = vmatprep.subr.bf16.mxu0 0
    %128 = vmatpush1.bf16.msra.mxu0 %v103
    %129 = vmatprep.subr.bf16.mxu0 0
    %130 = vmatpush1.bf16.msra.mxu0 %v102
    %131 = vmatprep.subr.bf16.mxu0 0
    %132 = vmatpush1.bf16.msra.mxu0 %v101
    %133 = vmatprep.subr.bf16.mxu0 0
    %134 = vmatpush2.bf16.msra.mxu0 0
    %135 = vmatprep.subr.bf16.mxu0 0
    %136 = vmatpush2.bf16.msra.mxu0 0
    %137 = vmatprep.subr.bf16.mxu0 0
    %138 = vmatpush2.bf16.msra.mxu0 0
    %139 = vmatprep.subr.bf16.mxu0 0
    %140 = vmatpush2.bf16.msra.mxu0 0
    %141 = vmatprep.subr.bf16.mxu0 0
    %142 = vmatpush2.bf16.msra.mxu0 0
    %143 = vmatprep.subr.bf16.mxu0 0
    %144 = vmatpush2.bf16.msra.mxu0 0
    %145 = vmatprep.subr.bf16.mxu0 0
    %146 = vmatpush2.bf16.msra.mxu0 0
    %147 = vmatprep.subr.bf16.mxu0 0
    %148 = vmatpush2.bf16.msra.mxu0 0
    %149 = vmatprep.mubr.bf16.mxu0 0
    %150 = vmatmul.mubr.bf16.gmra.mxu0 %v65
    %v151 = vpop.f32.mrf.mxu0
    %v152 = vadd.f32 0.0, %v151
    %v153 = vpop.f32.mrf.mxu0
    %v154 = vpop.f32.mrf.mxu0
    %v155 = vpop.f32.mrf.mxu0
    %156 = vdwg.mxu0
    %157 = vmatprep.subr.bf16.mxu0 0
    %158 = vmatpush1.bf16.msra.mxu0 %v108
    %159 = vmatprep.subr.bf16.mxu0 0
    %160 = vmatpush1.bf16.msra.mxu0 %v107
    %161 = vmatprep.subr.bf16.mxu0 0
    %162 = vmatpush1.bf16.msra.mxu0 %v106
    %163 = vmatprep.subr.bf16.mxu0 0
    %164 = vmatpush1.bf16.msra.mxu0 %v105
    %165 = vmatprep.subr.bf16.mxu0 0
    %166 = vmatpush1.bf16.msra.mxu0 %v104
    %167 = vmatprep.subr.bf16.mxu0 0
    %168 = vmatpush1.bf16.msra.mxu0 %v103
    %169 = vmatprep.subr.bf16.mxu0 0
    %170 = vmatpush1.bf16.msra.mxu0 %v102
    %171 = vmatprep.subr.bf16.mxu0 0
    %172 = vmatpush1.bf16.msra.mxu0 %v101
    %173 = vmatprep.subr.bf16.mxu0 0
    %174 = vmatpush2.bf16.msra.mxu0 0
    %175 = vmatprep.subr.bf16.mxu0 0
    %176 = vmatpush2.bf16.msra.mxu0 0
    %177 = vmatprep.subr.bf16.mxu0 0
    %178 = vmatpush2.bf16.msra.mxu0 0
    %179 = vmatprep.subr.bf16.mxu0 0
    %180 = vmatpush2.bf16.msra.mxu0 0
    %181 = vmatprep.subr.bf16.mxu0 0
    %182 = vmatpush2.bf16.msra.mxu0 0
    %183 = vmatprep.subr.bf16.mxu0 0
    %184 = vmatpush2.bf16.msra.mxu0 0
    %185 = vmatprep.subr.bf16.mxu0 0
    %186 = vmatpush2.bf16.msra.mxu0 0
    %187 = vmatprep.subr.bf16.mxu0 0
    %188 = vmatpush2.bf16.msra.mxu0 0
    %189 = vmatprep.mubr.bf16.mxu0 0
    %190 = vmatmul.mubr.bf16.gmra.mxu0 %v62
    %v191 = vpop.f32.mrf.mxu0
    %v192 = vadd.f32 %v152, %v191
    %v193 = vpop.f32.mrf.mxu0
    %v194 = vpop.f32.mrf.mxu0
    %v195 = vpop.f32.mrf.mxu0
    %196 = vdwg.mxu0
    %197 = vmatprep.subr.bf16.mxu0 0
    %198 = vmatpush1.bf16.msra.mxu0 %v108
    %199 = vmatprep.subr.bf16.mxu0 0
    %200 = vmatpush1.bf16.msra.mxu0 %v107
    %201 = vmatprep.subr.bf16.mxu0 0
    %202 = vmatpush1.bf16.msra.mxu0 %v106
    %203 = vmatprep.subr.bf16.mxu0 0
    %204 = vmatpush1.bf16.msra.mxu0 %v105
    %205 = vmatprep.subr.bf16.mxu0 0
    %206 = vmatpush1.bf16.msra.mxu0 %v104
    %207 = vmatprep.subr.bf16.mxu0 0
    %208 = vmatpush1.bf16.msra.mxu0 %v103
    %209 = vmatprep.subr.bf16.mxu0 0
    %210 = vmatpush1.bf16.msra.mxu0 %v102
    %211 = vmatprep.subr.bf16.mxu0 0
    %212 = vmatpush1.bf16.msra.mxu0 %v101
    %213 = vmatprep.subr.bf16.mxu0 0
    %214 = vmatpush2.bf16.msra.mxu0 0
    %215 = vmatprep.subr.bf16.mxu0 0
    %216 = vmatpush2.bf16.msra.mxu0 0
    %217 = vmatprep.subr.bf16.mxu0 0
    %218 = vmatpush2.bf16.msra.mxu0 0
    %219 = vmatprep.subr.bf16.mxu0 0
    %220 = vmatpush2.bf16.msra.mxu0 0
    %221 = vmatprep.subr.bf16.mxu0 0
    %222 = vmatpush2.bf16.msra.mxu0 0
    %223 = vmatprep.subr.bf16.mxu0 0
    %224 = vmatpush2.bf16.msra.mxu0 0
    %225 = vmatprep.subr.bf16.mxu0 0
    %226 = vmatpush2.bf16.msra.mxu0 0
    %227 = vmatprep.subr.bf16.mxu0 0
    %228 = vmatpush2.bf16.msra.mxu0 0
    %229 = vmatprep.mubr.bf16.mxu0 0
    %230 = vmatmul.mubr.bf16.gmra.mxu0 %v68
    %v231 = vpop.f32.mrf.mxu0
    %v232 = vadd.f32 0.0, %v231
    %v233 = vpop.f32.mrf.mxu0
    %v234 = vpop.f32.mrf.mxu0
    %v235 = vpop.f32.mrf.mxu0
    %236 = vdwg.mxu0
    %v237 = vadd.f32 %v192, %v232
    %v238 = vmul.f32 %v237, 0.03125
    %v239 = vsub.f32 %v45, %v238
    %v240 = vmul.f32 %v239, %v239
    %v241 = vpack.c.bf16 %v240, %v240
    %v242 = vunpack.c.l.bf16 %v241
    %v243 = vsub.f32 %v240, %v242
    %v244 = vpack.c.bf16 %v243, %v243
    %v245 = vunpack.c.l.bf16 %v244
    %v246 = vsub.f32 %v243, %v245
    %v247 = vpack.c.bf16 %v246, %v246
    %248 = vmatprep.subr.bf16.mxu0 0
    %249 = vmatpush1.bf16.msra.mxu0 %v108
    %250 = vmatprep.subr.bf16.mxu0 0
    %251 = vmatpush1.bf16.msra.mxu0 %v107
    %252 = vmatprep.subr.bf16.mxu0 0
    %253 = vmatpush1.bf16.msra.mxu0 %v106
    %254 = vmatprep.subr.bf16.mxu0 0
    %255 = vmatpush1.bf16.msra.mxu0 %v105
    %256 = vmatprep.subr.bf16.mxu0 0
    %257 = vmatpush1.bf16.msra.mxu0 %v104
    %258 = vmatprep.subr.bf16.mxu0 0
    %259 = vmatpush1.bf16.msra.mxu0 %v103
    %260 = vmatprep.subr.bf16.mxu0 0
    %261 = vmatpush1.bf16.msra.mxu0 %v102
    %262 = vmatprep.subr.bf16.mxu0 0
    %263 = vmatpush1.bf16.msra.mxu0 %v101
    %264 = vmatprep.subr.bf16.mxu0 0
    %265 = vmatpush2.bf16.msra.mxu0 0
    %266 = vmatprep.subr.bf16.mxu0 0
    %267 = vmatpush2.bf16.msra.mxu0 0
    %268 = vmatprep.subr.bf16.mxu0 0
    %269 = vmatpush2.bf16.msra.mxu0 0
    %270 = vmatprep.subr.bf16.mxu0 0
    %271 = vmatpush2.bf16.msra.mxu0 0
    %272 = vmatprep.subr.bf16.mxu0 0
    %273 = vmatpush2.bf16.msra.mxu0 0
    %274 = vmatprep.subr.bf16.mxu0 0
    %275 = vmatpush2.bf16.msra.mxu0 0
    %276 = vmatprep.subr.bf16.mxu0 0
    %277 = vmatpush2.bf16.msra.mxu0 0
    %278 = vmatprep.subr.bf16.mxu0 0
    %279 = vmatpush2.bf16.msra.mxu0 0
    %280 = vmatprep.mubr.bf16.mxu0 0
    %281 = vmatmul.mubr.bf16.gmra.mxu0 %v244
    %v282 = vpop.f32.mrf.mxu0
    %v283 = vadd.f32 0.0, %v282
    %v284 = vpop.f32.mrf.mxu0
    %v285 = vpop.f32.mrf.mxu0
    %v286 = vpop.f32.mrf.mxu0
    %287 = vdwg.mxu0
    %288 = vmatprep.subr.bf16.mxu0 0
    %289 = vmatpush1.bf16.msra.mxu0 %v108
    %290 = vmatprep.subr.bf16.mxu0 0
    %291 = vmatpush1.bf16.msra.mxu0 %v107
    %292 = vmatprep.subr.bf16.mxu0 0
    %293 = vmatpush1.bf16.msra.mxu0 %v106
    %294 = vmatprep.subr.bf16.mxu0 0
    %295 = vmatpush1.bf16.msra.mxu0 %v105
    %296 = vmatprep.subr.bf16.mxu0 0
    %297 = vmatpush1.bf16.msra.mxu0 %v104
    %298 = vmatprep.subr.bf16.mxu0 0
    %299 = vmatpush1.bf16.msra.mxu0 %v103
    %300 = vmatprep.subr.bf16.mxu0 0
    %301 = vmatpush1.bf16.msra.mxu0 %v102
    %302 = vmatprep.subr.bf16.mxu0 0
    %303 = vmatpush1.bf16.msra.mxu0 %v101
    %304 = vmatprep.subr.bf16.mxu0 0
    %305 = vmatpush2.bf16.msra.mxu0 0
    %306 = vmatprep.subr.bf16.mxu0 0
    %307 = vmatpush2.bf16.msra.mxu0 0
    %308 = vmatprep.subr.bf16.mxu0 0
    %309 = vmatpush2.bf16.msra.mxu0 0
    %310 = vmatprep.subr.bf16.mxu0 0
    %311 = vmatpush2.bf16.msra.mxu0 0
    %312 = vmatprep.subr.bf16.mxu0 0
    %313 = vmatpush2.bf16.msra.mxu0 0
    %314 = vmatprep.subr.bf16.mxu0 0
    %315 = vmatpush2.bf16.msra.mxu0 0
    %316 = vmatprep.subr.bf16.mxu0 0
    %317 = vmatpush2.bf16.msra.mxu0 0
    %318 = vmatprep.subr.bf16.mxu0 0
    %319 = vmatpush2.bf16.msra.mxu0 0
    %320 = vmatprep.mubr.bf16.mxu0 0
    %321 = vmatmul.mubr.bf16.gmra.mxu0 %v241
    %v322 = vpop.f32.mrf.mxu0
    %v323 = vadd.f32 %v283, %v322
    %v324 = vpop.f32.mrf.mxu0
    %v325 = vpop.f32.mrf.mxu0
    %v326 = vpop.f32.mrf.mxu0
    %327 = vdwg.mxu0
    %328 = vmatprep.subr.bf16.mxu0 0
    %329 = vmatpush1.bf16.msra.mxu0 %v108
    %330 = vmatprep.subr.bf16.mxu0 0
    %331 = vmatpush1.bf16.msra.mxu0 %v107
    %332 = vmatprep.subr.bf16.mxu0 0
    %333 = vmatpush1.bf16.msra.mxu0 %v106
    %334 = vmatprep.subr.bf16.mxu0 0
    %335 = vmatpush1.bf16.msra.mxu0 %v105
    %336 = vmatprep.subr.bf16.mxu0 0
    %337 = vmatpush1.bf16.msra.mxu0 %v104
    %338 = vmatprep.subr.bf16.mxu0 0
    %339 = vmatpush1.bf16.msra.mxu0 %v103
    %340 = vmatprep.subr.bf16.mxu0 0
    %341 = vmatpush1.bf16.msra.mxu0 %v102
    %342 = vmatprep.subr.bf16.mxu0 0
    %343 = vmatpush1.bf16.msra.mxu0 %v101
    %344 = vmatprep.subr.bf16.mxu0 0
    %345 = vmatpush2.bf16.msra.mxu0 0
    %346 = vmatprep.subr.bf16.mxu0 0
    %347 = vmatpush2.bf16.msra.mxu0 0
    %348 = vmatprep.subr.bf16.mxu0 0
    %349 = vmatpush2.bf16.msra.mxu0 0
    %350 = vmatprep.subr.bf16.mxu0 0
    %351 = vmatpush2.bf16.msra.mxu0 0
    %352 = vmatprep.subr.bf16.mxu0 0
    %353 = vmatpush2.bf16.msra.mxu0 0
    %354 = vmatprep.subr.bf16.mxu0 0
    %355 = vmatpush2.bf16.msra.mxu0 0
    %356 = vmatprep.subr.bf16.mxu0 0
    %357 = vmatpush2.bf16.msra.mxu0 0
    %358 = vmatprep.subr.bf16.mxu0 0
    %359 = vmatpush2.bf16.msra.mxu0 0
    %360 = vmatprep.mubr.bf16.mxu0 0
    %361 = vmatmul.mubr.bf16.gmra.mxu0 %v247
    %v362 = vpop.f32.mrf.mxu0
    %v363 = vadd.f32 0.0, %v362
    %v364 = vpop.f32.mrf.mxu0
    %v365 = vpop.f32.mrf.mxu0
    %v366 = vpop.f32.mrf.mxu0
    %367 = vdwg.mxu0
    %v368 = vadd.f32 %v323, %v363
    %v369 = vmul.f32 %v368, 0.03125
    %v370 = vadd.f32 %v369, 1e-06
    %v371 = vrsqrt.pop %v370
    %v372 = vmul.f32 %v239, %v371
    %v373 = vld [vmem:[%s2] sm:$0x1]
    %v375 = vlaneseq
    %v376 = vshrl.u32 %v375, 7
    %v377 = vsub.s32 0, %v376
    %v378 = vrot.slane %v373, %v377
    %v380 = vmul.f32 %v372, %v378
    %v381 = vld [vmem:[%s3] sm:$0x1]
    %v383 = vlaneseq
    %v384 = vshrl.u32 %v383, 7
    %v385 = vsub.s32 0, %v384
    %v386 = vrot.slane %v381, %v385
    %v388 = vadd.f32 %v380, %v386
    %389 = vst [vmem:[#allocation7] sm:$0xf] %v388
    // Predicated region
    $region26: #{tpu_custom_call.1} parent=1 // pred_check
      _
    $region27: #{tpu_custom_call.1} parent=1 // pred_check_branch
      %391 = sbr.rel (0) target = $region29
    $region28: #{tpu_custom_call.1} parent=1 // pred_region
      %s393 = ssub.s32 64, 64
      %394 = vsyncadd [#allocation4], %s393
      %s396 = sshll.u32 [#allocation7], 4
      %s397 = int_to_ptr.vmem [resolvable:$true] %s396
      %399 = dma.vmem_to_hbm [thread:$0]  %s397, 64, %s4, [#allocation4]
    $region29: #{tpu_custom_call.1} parent=1 // pred_fallthru
      _
    // Predicated region
    $region30: #{tpu_custom_call.1} parent=1 // pred_check
      _
    $region31: #{tpu_custom_call.1} parent=1 // pred_check_branch
      %401 = sbr.rel (0) target = $region33
    $region32: #{tpu_custom_call.1} parent=1 // pred_region
      %402 = dma.done [#allocation4], 64
    $region33: #{tpu_custom_call.1} parent=1 // pred_fallthru
      _
    %403 = vsyncpa [#allocation3], 1
    %404 = vsyncpa [#allocation6], 1
    %405 = vsyncpa [#allocation4], 1

</llo_original>
